<compile_context>
chip_gen: v7x
topology: tpu7x:2x2x1
jax: 0.10.0
libtpu: 0.0.40
codegen_flags: <defaults>
</compile_context>

<pallas_src>
import numpy as np
import jax
import jax.numpy as jnp
from jax.experimental import pallas as pl
from jax.experimental.pallas import tpu as pltpu

# ------------------------------- dimensions --------------------------------
XDIM, RDIM, LINV, ANGV, UDIM = 3, 9, 3, 3, 4
POSEDIM = XDIM + RDIM                 # 12
TWISTDIM = LINV + ANGV                # 6
FEAT = POSEDIM + TWISTDIM + UDIM      # 22

IN_FEAT = FEAT - XDIM                 # 19: kernel never reads the position x
OUT_FEAT = POSEDIM + TWISTDIM         # 18: control rows of the output are 0

SUB, LANE = 8, 128                    # (sublane, lane) shape of one vreg plane
PLANE = SUB * LANE                    # 1024 batch elements per feature plane
KB_TARGET = 8                         # planes per grid step (8192 batch elems)

# ------------------------------- constants ---------------------------------
_MASS = 0.027
_M = 1.0 / _MASS                      # M_q_inv1 diagonal
_M_INV = _MASS                        # inverse(M_q_inv1) diagonal
_J = (2.3951e-05, 2.3951e-05, 3.2347e-05)   # inertia diagonal (inverse(M_q_inv2))
_JI = tuple(1.0 / j for j in _J)            # M_q_inv2 diagonal
_G = _MASS * 9.81                     # dV/dz


# -------------------------------- kernel -----------------------------------
def _se3_kernel(in_ref, out_ref):
    """in_ref: (19, kb, 8, 128); out_ref: (18, kb, 8, 128).

    Trimmed input feature order : R(9) | q_dot_v(3) | q_dot_w(3) | u(4)
    Trimmed output feature order: dx(3) | dR(9) | dv(3) | dw(3)
    """
    r = [in_ref[i] for i in range(9)]             # rotation matrix, row-major
    v = [in_ref[9 + i] for i in range(3)]         # q_dot_v  (== dH/dpv)
    w = [in_ref[12 + i] for i in range(3)]        # q_dot_w  (== dH/dpw)
    u = [in_ref[15 + i] for i in range(4)]        # controls

    # dx = R @ dH/dpv
    out_ref[0] = r[0] * v[0] + r[1] * v[1] + r[2] * v[2]
    out_ref[1] = r[3] * v[0] + r[4] * v[1] + r[5] * v[2]
    out_ref[2] = r[6] * v[0] + r[7] * v[1] + r[8] * v[2]

    # dR row i = cross(R_row_i, dH/dpw)
    for i in range(3):
        a0, a1, a2 = r[3 * i], r[3 * i + 1], r[3 * i + 2]
        out_ref[3 + 3 * i + 0] = a1 * w[2] - a2 * w[1]
        out_ref[3 + 3 * i + 1] = a2 * w[0] - a0 * w[2]
        out_ref[3 + 3 * i + 2] = a0 * w[1] - a1 * w[0]

    # momenta p = inverse(M_q_inv) @ q_dot
    pv = [_M_INV * v[i] for i in range(3)]
    pw = [_J[i] * w[i] for i in range(3)]

    # dpv = cross(pv, dH/dpw) - R^T [0,0,g] + [0,0,u0];   dv = M_q_inv1 @ dpv
    out_ref[12] = _M * ((pv[1] * w[2] - pv[2] * w[1]) - _G * r[6])
    out_ref[13] = _M * ((pv[2] * w[0] - pv[0] * w[2]) - _G * r[7])
    out_ref[14] = _M * ((pv[0] * w[1] - pv[1] * w[0]) - _G * r[8] + u[0])

    # dpw = cross(pw, dH/dpw) + u[1:4]     (cross(pv, dHdpv) == 0,
    #                                       cross(R_i, dHdR_i) == 0)
    # dw  = M_q_inv2 @ dpw
    out_ref[15] = _JI[0] * ((pw[1] * w[2] - pw[2] * w[1]) + u[1])
    out_ref[16] = _JI[1] * ((pw[2] * w[0] - pw[0] * w[2]) + u[2])
    out_ref[17] = _JI[2] * ((pw[0] * w[1] - pw[1] * w[0]) + u[3])


# ------------------------------- wrappers -----------------------------------
def _pallas_dynamics(x):
    B = x.shape[0]
    nblk_min = pl.cdiv(B, PLANE)
    kb = min(KB_TARGET, nblk_min)          # planes per grid step
    chunk = kb * PLANE
    Bp = ((B + chunk - 1) // chunk) * chunk
    nblk = Bp // PLANE

    # (B, 22) -> trimmed feature-major planes (19, nblk, 8, 128).
    # TODO(synk): for ODE-integrator use, keep the state feature-major across
    # steps so this transpose/pad leaves the hot path entirely.
    xt = jnp.pad(x[:, XDIM:].T, ((0, 0), (0, Bp - B)))
    xp = xt.reshape(IN_FEAT, nblk, SUB, LANE)

    out = pl.pallas_call(
        _se3_kernel,
        out_shape=jax.ShapeDtypeStruct((OUT_FEAT, nblk, SUB, LANE), jnp.float32),
        grid=(nblk // kb,),
        in_specs=[pl.BlockSpec((IN_FEAT, kb, SUB, LANE), lambda g: (0, g, 0, 0))],
        out_specs=pl.BlockSpec((OUT_FEAT, kb, SUB, LANE), lambda g: (0, g, 0, 0)),
        compiler_params=pltpu.CompilerParams(dimension_semantics=("parallel",)),
    )(xp)

    out = out.reshape(OUT_FEAT, Bp)[:, :B].T                     # (B, 18)
    return jnp.concatenate([out, jnp.zeros((B, UDIM), jnp.float32)], axis=1)


def _dynamics_jax(x):
    """Pure-JAX path, structured like the torch module (also the reference)."""
    B = x.shape[0]
    q = x[:, :POSEDIM]
    qdv = x[:, POSEDIM:POSEDIM + LINV]
    qdw = x[:, POSEDIM + LINV:POSEDIM + TWISTDIM]
    u = x[:, POSEDIM + TWISTDIM:]
    R = q[:, XDIM:].reshape(B, 3, 3)

    M_q_inv1_np = (1.0 / 0.027) * np.eye(3, dtype=np.float32)
    M_q_inv2_np = np.linalg.inv(np.diag(_J)).astype(np.float32)
    M1 = jnp.asarray(np.linalg.inv(M_q_inv1_np), jnp.float32)     # mass matrix
    M2 = jnp.asarray(np.linalg.inv(M_q_inv2_np), jnp.float32)     # inertia
    M_q_inv1 = jnp.asarray(M_q_inv1_np)
    M_q_inv2 = jnp.asarray(M_q_inv2_np)

    pv = qdv @ M1.T
    pw = qdw @ M2.T

    # exact analytic gradient of the quadratic Hamiltonian
    dHdx = jnp.concatenate(
        [jnp.zeros((B, 2), jnp.float32),
         jnp.full((B, 1), 0.027 * 9.81, jnp.float32)], axis=1)
    dHdR = jnp.zeros((B, 9), jnp.float32)
    dHdpv = pv @ M_q_inv1.T
    dHdpw = pw @ M_q_inv2.T

    F = jnp.concatenate(
        [jnp.zeros((B, 2), jnp.float32), u[:, 0:1], u[:, 1:4]], axis=1)

    dx = jnp.einsum("bij,bj->bi", R, dHdpv)
    dR = jnp.concatenate(
        [jnp.cross(R[:, 0, :], dHdpw),
         jnp.cross(R[:, 1, :], dHdpw),
         jnp.cross(R[:, 2, :], dHdpw)], axis=1)
    dpv = (jnp.cross(pv, dHdpw)
           - jnp.einsum("bji,bj->bi", R, dHdx) + F[:, 0:3])
    dpw = (jnp.cross(pw, dHdpw) + jnp.cross(pv, dHdpv)
           + jnp.cross(R[:, 0, :], dHdR[:, 0:3])
           + jnp.cross(R[:, 1, :], dHdR[:, 3:6])
           + jnp.cross(R[:, 2, :], dHdR[:, 6:9])
           + F[:, 3:6])
    dv = dpv @ M_q_inv1.T
    dw = dpw @ M_q_inv2.T
    return jnp.concatenate(
        [dx, dR, dv, dw, jnp.zeros((B, UDIM), jnp.float32)], axis=1)


def se3_ham_node_gt(t, x, use_pallas=None):
    """Pallas implementation of SE3HamNODEGT.forward(t, input).

    x: (B, 22) float32 -> (B, 22) float32.
    """
    del t                                        # dynamics are time-invariant
    x = jnp.asarray(x, jnp.float32)
    if use_pallas is None:
        # Below a few thousand rows the launch + layout cost of the pallas
        # path exceeds the fused XLA elementwise path.
        use_pallas = x.shape[0] >= 4096
    return _pallas_dynamics(x) if use_pallas else _dynamics_jax(x)


# --------------------------------- main -------------------------------------
if __name__ == "__main__":
    key = jax.random.PRNGKey(0)
    B = 2
    x = jax.random.normal(key, (B, FEAT), dtype=jnp.float32)
    t = jnp.float32(0.0)

    out = se3_ham_node_gt(t, x, use_pallas=True)   # force the Pallas kernel
    out = jax.block_until_ready(out)

    ref = _dynamics_jax(x)
    assert out.shape == (B, FEAT), out.shape
    # dw rows are scaled by ~4e4 (J^-1); rtol covers that, atol covers zeros.
    np.testing.assert_allclose(np.asarray(out), np.asarray(ref),
                               rtol=1e-4, atol=1e-2)

    print("KERNEL_OK")
</pallas_src>

<mosaic_0001>
module attributes {stable_mosaic.version = 11 : i64} {
  func.func @_se3_kernel(%arg0: i32, %arg1: memref<19x1x8x128xf32, #tpu.memory_space<vmem>>, %arg2: memref<18x1x8x128xf32, #tpu.memory_space<vmem>>) attributes {dimension_semantics = [#tpu.dimension_semantics<parallel>], iteration_bounds = array<i64: 1>, scalar_prefetch = 0 : i64, scratch_operands = 0 : i64, tpu.core_type = #tpu.core_type<tc>, window_params = [{transform_indices = @transform_0, window_bounds = array<i64: 19, 1, 8, 128>}, {transform_indices = @transform_1, window_bounds = array<i64: 18, 1, 8, 128>}]} {
    %c0 = arith.constant 0 : index
    %c0_0 = arith.constant 0 : index
    %c0_1 = arith.constant 0 : index
    %c0_2 = arith.constant 0 : index
    %0 = vector.load %arg1[%c0, %c0_0, %c0_1, %c0_2] : memref<19x1x8x128xf32, #tpu.memory_space<vmem>>, vector<1x1x8x128xf32>
    %1 = vector.shape_cast %0 : vector<1x1x8x128xf32> to vector<1x8x128xf32>
    %c1 = arith.constant 1 : index
    %c0_3 = arith.constant 0 : index
    %c0_4 = arith.constant 0 : index
    %c0_5 = arith.constant 0 : index
    %2 = vector.load %arg1[%c1, %c0_3, %c0_4, %c0_5] : memref<19x1x8x128xf32, #tpu.memory_space<vmem>>, vector<1x1x8x128xf32>
    %3 = vector.shape_cast %2 : vector<1x1x8x128xf32> to vector<1x8x128xf32>
    %c2 = arith.constant 2 : index
    %c0_6 = arith.constant 0 : index
    %c0_7 = arith.constant 0 : index
    %c0_8 = arith.constant 0 : index
    %4 = vector.load %arg1[%c2, %c0_6, %c0_7, %c0_8] : memref<19x1x8x128xf32, #tpu.memory_space<vmem>>, vector<1x1x8x128xf32>
    %5 = vector.shape_cast %4 : vector<1x1x8x128xf32> to vector<1x8x128xf32>
    %c3 = arith.constant 3 : index
    %c0_9 = arith.constant 0 : index
    %c0_10 = arith.constant 0 : index
    %c0_11 = arith.constant 0 : index
    %6 = vector.load %arg1[%c3, %c0_9, %c0_10, %c0_11] : memref<19x1x8x128xf32, #tpu.memory_space<vmem>>, vector<1x1x8x128xf32>
    %7 = vector.shape_cast %6 : vector<1x1x8x128xf32> to vector<1x8x128xf32>
    %c4 = arith.constant 4 : index
    %c0_12 = arith.constant 0 : index
    %c0_13 = arith.constant 0 : index
    %c0_14 = arith.constant 0 : index
    %8 = vector.load %arg1[%c4, %c0_12, %c0_13, %c0_14] : memref<19x1x8x128xf32, #tpu.memory_space<vmem>>, vector<1x1x8x128xf32>
    %9 = vector.shape_cast %8 : vector<1x1x8x128xf32> to vector<1x8x128xf32>
    %c5 = arith.constant 5 : index
    %c0_15 = arith.constant 0 : index
    %c0_16 = arith.constant 0 : index
    %c0_17 = arith.constant 0 : index
    %10 = vector.load %arg1[%c5, %c0_15, %c0_16, %c0_17] : memref<19x1x8x128xf32, #tpu.memory_space<vmem>>, vector<1x1x8x128xf32>
    %11 = vector.shape_cast %10 : vector<1x1x8x128xf32> to vector<1x8x128xf32>
    %c6 = arith.constant 6 : index
    %c0_18 = arith.constant 0 : index
    %c0_19 = arith.constant 0 : index
    %c0_20 = arith.constant 0 : index
    %12 = vector.load %arg1[%c6, %c0_18, %c0_19, %c0_20] : memref<19x1x8x128xf32, #tpu.memory_space<vmem>>, vector<1x1x8x128xf32>
    %13 = vector.shape_cast %12 : vector<1x1x8x128xf32> to vector<1x8x128xf32>
    %c7 = arith.constant 7 : index
    %c0_21 = arith.constant 0 : index
    %c0_22 = arith.constant 0 : index
    %c0_23 = arith.constant 0 : index
    %14 = vector.load %arg1[%c7, %c0_21, %c0_22, %c0_23] : memref<19x1x8x128xf32, #tpu.memory_space<vmem>>, vector<1x1x8x128xf32>
    %15 = vector.shape_cast %14 : vector<1x1x8x128xf32> to vector<1x8x128xf32>
    %c8 = arith.constant 8 : index
    %c0_24 = arith.constant 0 : index
    %c0_25 = arith.constant 0 : index
    %c0_26 = arith.constant 0 : index
    %16 = vector.load %arg1[%c8, %c0_24, %c0_25, %c0_26] : memref<19x1x8x128xf32, #tpu.memory_space<vmem>>, vector<1x1x8x128xf32>
    %17 = vector.shape_cast %16 : vector<1x1x8x128xf32> to vector<1x8x128xf32>
    %c9 = arith.constant 9 : index
    %c0_27 = arith.constant 0 : index
    %c0_28 = arith.constant 0 : index
    %c0_29 = arith.constant 0 : index
    %18 = vector.load %arg1[%c9, %c0_27, %c0_28, %c0_29] : memref<19x1x8x128xf32, #tpu.memory_space<vmem>>, vector<1x1x8x128xf32>
    %19 = vector.shape_cast %18 : vector<1x1x8x128xf32> to vector<1x8x128xf32>
    %c10 = arith.constant 10 : index
    %c0_30 = arith.constant 0 : index
    %c0_31 = arith.constant 0 : index
    %c0_32 = arith.constant 0 : index
    %20 = vector.load %arg1[%c10, %c0_30, %c0_31, %c0_32] : memref<19x1x8x128xf32, #tpu.memory_space<vmem>>, vector<1x1x8x128xf32>
    %21 = vector.shape_cast %20 : vector<1x1x8x128xf32> to vector<1x8x128xf32>
    %c11 = arith.constant 11 : index
    %c0_33 = arith.constant 0 : index
    %c0_34 = arith.constant 0 : index
    %c0_35 = arith.constant 0 : index
    %22 = vector.load %arg1[%c11, %c0_33, %c0_34, %c0_35] : memref<19x1x8x128xf32, #tpu.memory_space<vmem>>, vector<1x1x8x128xf32>
    %23 = vector.shape_cast %22 : vector<1x1x8x128xf32> to vector<1x8x128xf32>
    %c12 = arith.constant 12 : index
    %c0_36 = arith.constant 0 : index
    %c0_37 = arith.constant 0 : index
    %c0_38 = arith.constant 0 : index
    %24 = vector.load %arg1[%c12, %c0_36, %c0_37, %c0_38] : memref<19x1x8x128xf32, #tpu.memory_space<vmem>>, vector<1x1x8x128xf32>
    %25 = vector.shape_cast %24 : vector<1x1x8x128xf32> to vector<1x8x128xf32>
    %c13 = arith.constant 13 : index
    %c0_39 = arith.constant 0 : index
    %c0_40 = arith.constant 0 : index
    %c0_41 = arith.constant 0 : index
    %26 = vector.load %arg1[%c13, %c0_39, %c0_40, %c0_41] : memref<19x1x8x128xf32, #tpu.memory_space<vmem>>, vector<1x1x8x128xf32>
    %27 = vector.shape_cast %26 : vector<1x1x8x128xf32> to vector<1x8x128xf32>
    %c14 = arith.constant 14 : index
    %c0_42 = arith.constant 0 : index
    %c0_43 = arith.constant 0 : index
    %c0_44 = arith.constant 0 : index
    %28 = vector.load %arg1[%c14, %c0_42, %c0_43, %c0_44] : memref<19x1x8x128xf32, #tpu.memory_space<vmem>>, vector<1x1x8x128xf32>
    %29 = vector.shape_cast %28 : vector<1x1x8x128xf32> to vector<1x8x128xf32>
    %c15 = arith.constant 15 : index
    %c0_45 = arith.constant 0 : index
    %c0_46 = arith.constant 0 : index
    %c0_47 = arith.constant 0 : index
    %30 = vector.load %arg1[%c15, %c0_45, %c0_46, %c0_47] : memref<19x1x8x128xf32, #tpu.memory_space<vmem>>, vector<1x1x8x128xf32>
    %31 = vector.shape_cast %30 : vector<1x1x8x128xf32> to vector<1x8x128xf32>
    %c16 = arith.constant 16 : index
    %c0_48 = arith.constant 0 : index
    %c0_49 = arith.constant 0 : index
    %c0_50 = arith.constant 0 : index
    %32 = vector.load %arg1[%c16, %c0_48, %c0_49, %c0_50] : memref<19x1x8x128xf32, #tpu.memory_space<vmem>>, vector<1x1x8x128xf32>
    %33 = vector.shape_cast %32 : vector<1x1x8x128xf32> to vector<1x8x128xf32>
    %c17 = arith.constant 17 : index
    %c0_51 = arith.constant 0 : index
    %c0_52 = arith.constant 0 : index
    %c0_53 = arith.constant 0 : index
    %34 = vector.load %arg1[%c17, %c0_51, %c0_52, %c0_53] : memref<19x1x8x128xf32, #tpu.memory_space<vmem>>, vector<1x1x8x128xf32>
    %35 = vector.shape_cast %34 : vector<1x1x8x128xf32> to vector<1x8x128xf32>
    %c18 = arith.constant 18 : index
    %c0_54 = arith.constant 0 : index
    %c0_55 = arith.constant 0 : index
    %c0_56 = arith.constant 0 : index
    %36 = vector.load %arg1[%c18, %c0_54, %c0_55, %c0_56] : memref<19x1x8x128xf32, #tpu.memory_space<vmem>>, vector<1x1x8x128xf32>
    %37 = vector.shape_cast %36 : vector<1x1x8x128xf32> to vector<1x8x128xf32>
    %38 = arith.mulf %1, %19 : vector<1x8x128xf32>
    %39 = arith.mulf %3, %21 : vector<1x8x128xf32>
    %40 = arith.addf %38, %39 : vector<1x8x128xf32>
    %41 = arith.mulf %5, %23 : vector<1x8x128xf32>
    %42 = arith.addf %40, %41 : vector<1x8x128xf32>
    %c0_57 = arith.constant 0 : index
    %c0_58 = arith.constant 0 : index
    %c0_59 = arith.constant 0 : index
    %c0_60 = arith.constant 0 : index
    %43 = vector.load %arg2[%c0_57, %c0_58, %c0_59, %c0_60] : memref<18x1x8x128xf32, #tpu.memory_space<vmem>>, vector<1x1x8x128xf32>
    %44 = vector.shape_cast %43 : vector<1x1x8x128xf32> to vector<1x8x128xf32>
    %45 = vector.shape_cast %42 : vector<1x8x128xf32> to vector<1x1x8x128xf32>
    tpu.vector_store %arg2[%c0_57, %c0_58, %c0_59, %c0_60], %45 {strides = array<i32>} : memref<18x1x8x128xf32, #tpu.memory_space<vmem>>, vector<1x1x8x128xf32>,
    %46 = arith.mulf %7, %19 : vector<1x8x128xf32>
    %47 = arith.mulf %9, %21 : vector<1x8x128xf32>
    %48 = arith.addf %46, %47 : vector<1x8x128xf32>
    %49 = arith.mulf %11, %23 : vector<1x8x128xf32>
    %50 = arith.addf %48, %49 : vector<1x8x128xf32>
    %c1_61 = arith.constant 1 : index
    %c0_62 = arith.constant 0 : index
    %c0_63 = arith.constant 0 : index
    %c0_64 = arith.constant 0 : index
    %51 = vector.load %arg2[%c1_61, %c0_62, %c0_63, %c0_64] : memref<18x1x8x128xf32, #tpu.memory_space<vmem>>, vector<1x1x8x128xf32>
    %52 = vector.shape_cast %51 : vector<1x1x8x128xf32> to vector<1x8x128xf32>
    %53 = vector.shape_cast %50 : vector<1x8x128xf32> to vector<1x1x8x128xf32>
    tpu.vector_store %arg2[%c1_61, %c0_62, %c0_63, %c0_64], %53 {strides = array<i32>} : memref<18x1x8x128xf32, #tpu.memory_space<vmem>>, vector<1x1x8x128xf32>,
    %54 = arith.mulf %13, %19 : vector<1x8x128xf32>
    %55 = arith.mulf %15, %21 : vector<1x8x128xf32>
    %56 = arith.addf %54, %55 : vector<1x8x128xf32>
    %57 = arith.mulf %17, %23 : vector<1x8x128xf32>
    %58 = arith.addf %56, %57 : vector<1x8x128xf32>
    %c2_65 = arith.constant 2 : index
    %c0_66 = arith.constant 0 : index
    %c0_67 = arith.constant 0 : index
    %c0_68 = arith.constant 0 : index
    %59 = vector.load %arg2[%c2_65, %c0_66, %c0_67, %c0_68] : memref<18x1x8x128xf32, #tpu.memory_space<vmem>>, vector<1x1x8x128xf32>
    %60 = vector.shape_cast %59 : vector<1x1x8x128xf32> to vector<1x8x128xf32>
    %61 = vector.shape_cast %58 : vector<1x8x128xf32> to vector<1x1x8x128xf32>
    tpu.vector_store %arg2[%c2_65, %c0_66, %c0_67, %c0_68], %61 {strides = array<i32>} : memref<18x1x8x128xf32, #tpu.memory_space<vmem>>, vector<1x1x8x128xf32>,
    %62 = arith.mulf %3, %29 : vector<1x8x128xf32>
    %63 = arith.mulf %5, %27 : vector<1x8x128xf32>
    %64 = arith.subf %62, %63 : vector<1x8x128xf32>
    %c3_69 = arith.constant 3 : index
    %c0_70 = arith.constant 0 : index
    %c0_71 = arith.constant 0 : index
    %c0_72 = arith.constant 0 : index
    %65 = vector.load %arg2[%c3_69, %c0_70, %c0_71, %c0_72] : memref<18x1x8x128xf32, #tpu.memory_space<vmem>>, vector<1x1x8x128xf32>
    %66 = vector.shape_cast %65 : vector<1x1x8x128xf32> to vector<1x8x128xf32>
    %67 = vector.shape_cast %64 : vector<1x8x128xf32> to vector<1x1x8x128xf32>
    tpu.vector_store %arg2[%c3_69, %c0_70, %c0_71, %c0_72], %67 {strides = array<i32>} : memref<18x1x8x128xf32, #tpu.memory_space<vmem>>, vector<1x1x8x128xf32>,
    %68 = arith.mulf %5, %25 : vector<1x8x128xf32>
    %69 = arith.mulf %1, %29 : vector<1x8x128xf32>
    %70 = arith.subf %68, %69 : vector<1x8x128xf32>
    %c4_73 = arith.constant 4 : index
    %c0_74 = arith.constant 0 : index
    %c0_75 = arith.constant 0 : index
    %c0_76 = arith.constant 0 : index
    %71 = vector.load %arg2[%c4_73, %c0_74, %c0_75, %c0_76] : memref<18x1x8x128xf32, #tpu.memory_space<vmem>>, vector<1x1x8x128xf32>
    %72 = vector.shape_cast %71 : vector<1x1x8x128xf32> to vector<1x8x128xf32>
    %73 = vector.shape_cast %70 : vector<1x8x128xf32> to vector<1x1x8x128xf32>
    tpu.vector_store %arg2[%c4_73, %c0_74, %c0_75, %c0_76], %73 {strides = array<i32>} : memref<18x1x8x128xf32, #tpu.memory_space<vmem>>, vector<1x1x8x128xf32>,
    %74 = arith.mulf %1, %27 : vector<1x8x128xf32>
    %75 = arith.mulf %3, %25 : vector<1x8x128xf32>
    %76 = arith.subf %74, %75 : vector<1x8x128xf32>
    %c5_77 = arith.constant 5 : index
    %c0_78 = arith.constant 0 : index
    %c0_79 = arith.constant 0 : index
    %c0_80 = arith.constant 0 : index
    %77 = vector.load %arg2[%c5_77, %c0_78, %c0_79, %c0_80] : memref<18x1x8x128xf32, #tpu.memory_space<vmem>>, vector<1x1x8x128xf32>
    %78 = vector.shape_cast %77 : vector<1x1x8x128xf32> to vector<1x8x128xf32>
    %79 = vector.shape_cast %76 : vector<1x8x128xf32> to vector<1x1x8x128xf32>
    tpu.vector_store %arg2[%c5_77, %c0_78, %c0_79, %c0_80], %79 {strides = array<i32>} : memref<18x1x8x128xf32, #tpu.memory_space<vmem>>, vector<1x1x8x128xf32>,
    %80 = arith.mulf %9, %29 : vector<1x8x128xf32>
    %81 = arith.mulf %11, %27 : vector<1x8x128xf32>
    %82 = arith.subf %80, %81 : vector<1x8x128xf32>
    %c6_81 = arith.constant 6 : index
    %c0_82 = arith.constant 0 : index
    %c0_83 = arith.constant 0 : index
    %c0_84 = arith.constant 0 : index
    %83 = vector.load %arg2[%c6_81, %c0_82, %c0_83, %c0_84] : memref<18x1x8x128xf32, #tpu.memory_space<vmem>>, vector<1x1x8x128xf32>
    %84 = vector.shape_cast %83 : vector<1x1x8x128xf32> to vector<1x8x128xf32>
    %85 = vector.shape_cast %82 : vector<1x8x128xf32> to vector<1x1x8x128xf32>
    tpu.vector_store %arg2[%c6_81, %c0_82, %c0_83, %c0_84], %85 {strides = array<i32>} : memref<18x1x8x128xf32, #tpu.memory_space<vmem>>, vector<1x1x8x128xf32>,
    %86 = arith.mulf %11, %25 : vector<1x8x128xf32>
    %87 = arith.mulf %7, %29 : vector<1x8x128xf32>
    %88 = arith.subf %86, %87 : vector<1x8x128xf32>
    %c7_85 = arith.constant 7 : index
    %c0_86 = arith.constant 0 : index
    %c0_87 = arith.constant 0 : index
    %c0_88 = arith.constant 0 : index
    %89 = vector.load %arg2[%c7_85, %c0_86, %c0_87, %c0_88] : memref<18x1x8x128xf32, #tpu.memory_space<vmem>>, vector<1x1x8x128xf32>
    %90 = vector.shape_cast %89 : vector<1x1x8x128xf32> to vector<1x8x128xf32>
    %91 = vector.shape_cast %88 : vector<1x8x128xf32> to vector<1x1x8x128xf32>
    tpu.vector_store %arg2[%c7_85, %c0_86, %c0_87, %c0_88], %91 {strides = array<i32>} : memref<18x1x8x128xf32, #tpu.memory_space<vmem>>, vector<1x1x8x128xf32>,
    %92 = arith.mulf %7, %27 : vector<1x8x128xf32>
    %93 = arith.mulf %9, %25 : vector<1x8x128xf32>
    %94 = arith.subf %92, %93 : vector<1x8x128xf32>
    %c8_89 = arith.constant 8 : index
    %c0_90 = arith.constant 0 : index
    %c0_91 = arith.constant 0 : index
    %c0_92 = arith.constant 0 : index
    %95 = vector.load %arg2[%c8_89, %c0_90, %c0_91, %c0_92] : memref<18x1x8x128xf32, #tpu.memory_space<vmem>>, vector<1x1x8x128xf32>
    %96 = vector.shape_cast %95 : vector<1x1x8x128xf32> to vector<1x8x128xf32>
    %97 = vector.shape_cast %94 : vector<1x8x128xf32> to vector<1x1x8x128xf32>
    tpu.vector_store %arg2[%c8_89, %c0_90, %c0_91, %c0_92], %97 {strides = array<i32>} : memref<18x1x8x128xf32, #tpu.memory_space<vmem>>, vector<1x1x8x128xf32>,
    %98 = arith.mulf %15, %29 : vector<1x8x128xf32>
    %99 = arith.mulf %17, %27 : vector<1x8x128xf32>
    %100 = arith.subf %98, %99 : vector<1x8x128xf32>
    %c9_93 = arith.constant 9 : index
    %c0_94 = arith.constant 0 : index
    %c0_95 = arith.constant 0 : index
    %c0_96 = arith.constant 0 : index
    %101 = vector.load %arg2[%c9_93, %c0_94, %c0_95, %c0_96] : memref<18x1x8x128xf32, #tpu.memory_space<vmem>>, vector<1x1x8x128xf32>
    %102 = vector.shape_cast %101 : vector<1x1x8x128xf32> to vector<1x8x128xf32>
    %103 = vector.shape_cast %100 : vector<1x8x128xf32> to vector<1x1x8x128xf32>
    tpu.vector_store %arg2[%c9_93, %c0_94, %c0_95, %c0_96], %103 {strides = array<i32>} : memref<18x1x8x128xf32, #tpu.memory_space<vmem>>, vector<1x1x8x128xf32>,
    %104 = arith.mulf %17, %25 : vector<1x8x128xf32>
    %105 = arith.mulf %13, %29 : vector<1x8x128xf32>
    %106 = arith.subf %104, %105 : vector<1x8x128xf32>
    %c10_97 = arith.constant 10 : index
    %c0_98 = arith.constant 0 : index
    %c0_99 = arith.constant 0 : index
    %c0_100 = arith.constant 0 : index
    %107 = vector.load %arg2[%c10_97, %c0_98, %c0_99, %c0_100] : memref<18x1x8x128xf32, #tpu.memory_space<vmem>>, vector<1x1x8x128xf32>
    %108 = vector.shape_cast %107 : vector<1x1x8x128xf32> to vector<1x8x128xf32>
    %109 = vector.shape_cast %106 : vector<1x8x128xf32> to vector<1x1x8x128xf32>
    tpu.vector_store %arg2[%c10_97, %c0_98, %c0_99, %c0_100], %109 {strides = array<i32>} : memref<18x1x8x128xf32, #tpu.memory_space<vmem>>, vector<1x1x8x128xf32>,
    %110 = arith.mulf %13, %27 : vector<1x8x128xf32>
    %111 = arith.mulf %15, %25 : vector<1x8x128xf32>
    %112 = arith.subf %110, %111 : vector<1x8x128xf32>
    %c11_101 = arith.constant 11 : index
    %c0_102 = arith.constant 0 : index
    %c0_103 = arith.constant 0 : index
    %c0_104 = arith.constant 0 : index
    %113 = vector.load %arg2[%c11_101, %c0_102, %c0_103, %c0_104] : memref<18x1x8x128xf32, #tpu.memory_space<vmem>>, vector<1x1x8x128xf32>
    %114 = vector.shape_cast %113 : vector<1x1x8x128xf32> to vector<1x8x128xf32>
    %115 = vector.shape_cast %112 : vector<1x8x128xf32> to vector<1x1x8x128xf32>
    tpu.vector_store %arg2[%c11_101, %c0_102, %c0_103, %c0_104], %115 {strides = array<i32>} : memref<18x1x8x128xf32, #tpu.memory_space<vmem>>, vector<1x1x8x128xf32>,
    %cst = arith.constant 2.700000e-02 : f32
    %116 = vector.broadcast %cst : f32 to vector<1x8x128xf32>
    %117 = arith.mulf %116, %19 : vector<1x8x128xf32>
    %cst_105 = arith.constant 2.700000e-02 : f32
    %118 = vector.broadcast %cst_105 : f32 to vector<1x8x128xf32>
    %119 = arith.mulf %118, %21 : vector<1x8x128xf32>
    %cst_106 = arith.constant 2.700000e-02 : f32
    %120 = vector.broadcast %cst_106 : f32 to vector<1x8x128xf32>
    %121 = arith.mulf %120, %23 : vector<1x8x128xf32>
    %cst_107 = arith.constant 2.395100e-05 : f32
    %122 = vector.broadcast %cst_107 : f32 to vector<1x8x128xf32>
    %123 = arith.mulf %122, %25 : vector<1x8x128xf32>
    %cst_108 = arith.constant 2.395100e-05 : f32
    %124 = vector.broadcast %cst_108 : f32 to vector<1x8x128xf32>
    %125 = arith.mulf %124, %27 : vector<1x8x128xf32>
    %cst_109 = arith.constant 3.234700e-05 : f32
    %126 = vector.broadcast %cst_109 : f32 to vector<1x8x128xf32>
    %127 = arith.mulf %126, %29 : vector<1x8x128xf32>
    %128 = arith.mulf %119, %29 : vector<1x8x128xf32>
    %129 = arith.mulf %121, %27 : vector<1x8x128xf32>
    %130 = arith.subf %128, %129 : vector<1x8x128xf32>
    %cst_110 = arith.constant 2.648700e-01 : f32
    %131 = vector.broadcast %cst_110 : f32 to vector<1x8x128xf32>
    %132 = arith.mulf %131, %13 : vector<1x8x128xf32>
    %133 = arith.subf %130, %132 : vector<1x8x128xf32>
    %cst_111 = arith.constant 37.0370369 : f32
    %134 = vector.broadcast %cst_111 : f32 to vector<1x8x128xf32>
    %135 = arith.mulf %134, %133 : vector<1x8x128xf32>
    %c12_112 = arith.constant 12 : index
    %c0_113 = arith.constant 0 : index
    %c0_114 = arith.constant 0 : index
    %c0_115 = arith.constant 0 : index
    %136 = vector.load %arg2[%c12_112, %c0_113, %c0_114, %c0_115] : memref<18x1x8x128xf32, #tpu.memory_space<vmem>>, vector<1x1x8x128xf32>
    %137 = vector.shape_cast %136 : vector<1x1x8x128xf32> to vector<1x8x128xf32>
    %138 = vector.shape_cast %135 : vector<1x8x128xf32> to vector<1x1x8x128xf32>
    tpu.vector_store %arg2[%c12_112, %c0_113, %c0_114, %c0_115], %138 {strides = array<i32>} : memref<18x1x8x128xf32, #tpu.memory_space<vmem>>, vector<1x1x8x128xf32>,
    %139 = arith.mulf %121, %25 : vector<1x8x128xf32>
    %140 = arith.mulf %117, %29 : vector<1x8x128xf32>
    %141 = arith.subf %139, %140 : vector<1x8x128xf32>
    %cst_116 = arith.constant 2.648700e-01 : f32
    %142 = vector.broadcast %cst_116 : f32 to vector<1x8x128xf32>
    %143 = arith.mulf %142, %15 : vector<1x8x128xf32>
    %144 = arith.subf %141, %143 : vector<1x8x128xf32>
    %cst_117 = arith.constant 37.0370369 : f32
    %145 = vector.broadcast %cst_117 : f32 to vector<1x8x128xf32>
    %146 = arith.mulf %145, %144 : vector<1x8x128xf32>
    %c13_118 = arith.constant 13 : index
    %c0_119 = arith.constant 0 : index
    %c0_120 = arith.constant 0 : index
    %c0_121 = arith.constant 0 : index
    %147 = vector.load %arg2[%c13_118, %c0_119, %c0_120, %c0_121] : memref<18x1x8x128xf32, #tpu.memory_space<vmem>>, vector<1x1x8x128xf32>
    %148 = vector.shape_cast %147 : vector<1x1x8x128xf32> to vector<1x8x128xf32>
    %149 = vector.shape_cast %146 : vector<1x8x128xf32> to vector<1x1x8x128xf32>
    tpu.vector_store %arg2[%c13_118, %c0_119, %c0_120, %c0_121], %149 {strides = array<i32>} : memref<18x1x8x128xf32, #tpu.memory_space<vmem>>, vector<1x1x8x128xf32>,
    %150 = arith.mulf %117, %27 : vector<1x8x128xf32>
    %151 = arith.mulf %119, %25 : vector<1x8x128xf32>
    %152 = arith.subf %150, %151 : vector<1x8x128xf32>
    %cst_122 = arith.constant 2.648700e-01 : f32
    %153 = vector.broadcast %cst_122 : f32 to vector<1x8x128xf32>
    %154 = arith.mulf %153, %17 : vector<1x8x128xf32>
    %155 = arith.subf %152, %154 : vector<1x8x128xf32>
    %156 = arith.addf %155, %31 : vector<1x8x128xf32>
    %cst_123 = arith.constant 37.0370369 : f32
    %157 = vector.broadcast %cst_123 : f32 to vector<1x8x128xf32>
    %158 = arith.mulf %157, %156 : vector<1x8x128xf32>
    %c14_124 = arith.constant 14 : index
    %c0_125 = arith.constant 0 : index
    %c0_126 = arith.constant 0 : index
    %c0_127 = arith.constant 0 : index
    %159 = vector.load %arg2[%c14_124, %c0_125, %c0_126, %c0_127] : memref<18x1x8x128xf32, #tpu.memory_space<vmem>>, vector<1x1x8x128xf32>
    %160 = vector.shape_cast %159 : vector<1x1x8x128xf32> to vector<1x8x128xf32>
    %161 = vector.shape_cast %158 : vector<1x8x128xf32> to vector<1x1x8x128xf32>
    tpu.vector_store %arg2[%c14_124, %c0_125, %c0_126, %c0_127], %161 {strides = array<i32>} : memref<18x1x8x128xf32, #tpu.memory_space<vmem>>, vector<1x1x8x128xf32>,
    %162 = arith.mulf %125, %29 : vector<1x8x128xf32>
    %163 = arith.mulf %127, %27 : vector<1x8x128xf32>
    %164 = arith.subf %162, %163 : vector<1x8x128xf32>
    %165 = arith.addf %164, %33 : vector<1x8x128xf32>
    %cst_128 = arith.constant 41751.9102 : f32
    %166 = vector.broadcast %cst_128 : f32 to vector<1x8x128xf32>
    %167 = arith.mulf %166, %165 : vector<1x8x128xf32>
    %c15_129 = arith.constant 15 : index
    %c0_130 = arith.constant 0 : index
    %c0_131 = arith.constant 0 : index
    %c0_132 = arith.constant 0 : index
    %168 = vector.load %arg2[%c15_129, %c0_130, %c0_131, %c0_132] : memref<18x1x8x128xf32, #tpu.memory_space<vmem>>, vector<1x1x8x128xf32>
    %169 = vector.shape_cast %168 : vector<1x1x8x128xf32> to vector<1x8x128xf32>
    %170 = vector.shape_cast %167 : vector<1x8x128xf32> to vector<1x1x8x128xf32>
    tpu.vector_store %arg2[%c15_129, %c0_130, %c0_131, %c0_132], %170 {strides = array<i32>} : memref<18x1x8x128xf32, #tpu.memory_space<vmem>>, vector<1x1x8x128xf32>,
    %171 = arith.mulf %127, %25 : vector<1x8x128xf32>
    %172 = arith.mulf %123, %29 : vector<1x8x128xf32>
    %173 = arith.subf %171, %172 : vector<1x8x128xf32>
    %174 = arith.addf %173, %35 : vector<1x8x128xf32>
    %cst_133 = arith.constant 41751.9102 : f32
    %175 = vector.broadcast %cst_133 : f32 to vector<1x8x128xf32>
    %176 = arith.mulf %175, %174 : vector<1x8x128xf32>
    %c16_134 = arith.constant 16 : index
    %c0_135 = arith.constant 0 : index
    %c0_136 = arith.constant 0 : index
    %c0_137 = arith.constant 0 : index
    %177 = vector.load %arg2[%c16_134, %c0_135, %c0_136, %c0_137] : memref<18x1x8x128xf32, #tpu.memory_space<vmem>>, vector<1x1x8x128xf32>
    %178 = vector.shape_cast %177 : vector<1x1x8x128xf32> to vector<1x8x128xf32>
    %179 = vector.shape_cast %176 : vector<1x8x128xf32> to vector<1x1x8x128xf32>
    tpu.vector_store %arg2[%c16_134, %c0_135, %c0_136, %c0_137], %179 {strides = array<i32>} : memref<18x1x8x128xf32, #tpu.memory_space<vmem>>, vector<1x1x8x128xf32>,
    %180 = arith.mulf %123, %27 : vector<1x8x128xf32>
    %181 = arith.mulf %125, %25 : vector<1x8x128xf32>
    %182 = arith.subf %180, %181 : vector<1x8x128xf32>
    %183 = arith.addf %182, %37 : vector<1x8x128xf32>
    %cst_138 = arith.constant 30914.7676 : f32
    %184 = vector.broadcast %cst_138 : f32 to vector<1x8x128xf32>
    %185 = arith.mulf %184, %183 : vector<1x8x128xf32>
    %c17_139 = arith.constant 17 : index
    %c0_140 = arith.constant 0 : index
    %c0_141 = arith.constant 0 : index
    %c0_142 = arith.constant 0 : index
    %186 = vector.load %arg2[%c17_139, %c0_140, %c0_141, %c0_142] : memref<18x1x8x128xf32, #tpu.memory_space<vmem>>, vector<1x1x8x128xf32>
    %187 = vector.shape_cast %186 : vector<1x1x8x128xf32> to vector<1x8x128xf32>
    %188 = vector.shape_cast %185 : vector<1x8x128xf32> to vector<1x1x8x128xf32>
    tpu.vector_store %arg2[%c17_139, %c0_140, %c0_141, %c0_142], %188 {strides = array<i32>} : memref<18x1x8x128xf32, #tpu.memory_space<vmem>>, vector<1x1x8x128xf32>,
    return
  }
  func.func @transform_0(%arg0: i32) -> (i32, i32, i32, i32) {
    %c0_i32 = arith.constant 0 : i32
    %c0_i32_0 = arith.constant 0 : i32
    %c0_i32_1 = arith.constant 0 : i32
    %c0_i32_2 = arith.constant 0 : i32
    return %c0_i32, %arg0, %c0_i32_0, %c0_i32_1 : i32, i32, i32, i32
  }
  func.func @transform_1(%arg0: i32) -> (i32, i32, i32, i32) {
    %c0_i32 = arith.constant 0 : i32
    %c0_i32_0 = arith.constant 0 : i32
    %c0_i32_1 = arith.constant 0 : i32
    %c0_i32_2 = arith.constant 0 : i32
    return %c0_i32, %arg0, %c0_i32_0, %c0_i32_1 : i32, i32, i32, i32
  }
}

</mosaic_0001>

<llo_original>
// kernel: tpu_custom_call.1
$region0: #{tpu_custom_call.1}
  #allocation0 [shape = 'u32[]', space=smem, size = 0x4, offset = 0x4, fixed_abs, tag = 'smem constant byte address 0x4 - core index']
  #allocation1 [shape = 'u32[144,128]{1,0:T(1,128)}', space=vmem, size = 0x12000, scoped, tag = 'internal scratch']
  %s0 = inlined_call_operand.hbm [shape: f32[19,1,8,128], index: 0, kind: input, shape index: {}]
  %s1 = inlined_call_operand.hbm [shape: f32[18,1,8,128], index: 1, kind: output, shape index: {}]
  %s2 = sld [smem:[#allocation0]]
  $region18: #{tpu_custom_call.1} parent=0
    _
  %s4 = ssub.s32 1, %s2
  %s5 = scalar_select 0, %s4, %s2
  $region1: #{tpu_custom_call.1} parent=0
    #allocation2 [shape = 'u8[77824]{0}', space=vmem, size = 0x13000, scoped, tag = 'input window, operand 0, single buffered']
    #allocation3 [shape = 's32[1]{0}', space=sflag, size = 0x4, scoped, tag = 'scoped memory for tpu_custom_call.1']
    #allocation4 [shape = 's32[1]{0}', space=sflag, size = 0x4, scoped, tag = 'scoped memory for tpu_custom_call.1']
    #allocation5 [shape = 'u8[73728]{0}', space=vmem, size = 0x12000, scoped, tag = 'output window, operand 0, single buffered']
    %6 = vsyncpa [#allocation3], 0
    %7 = vsyncpa [#allocation4], 0
    // Predicated region
    $region2: #{tpu_custom_call.1} parent=1 // pred_check
      _
    $region3: #{tpu_custom_call.1} parent=1 // pred_check_branch
      %9 = sbr.rel (0) target = $region5
    $region4: #{tpu_custom_call.1} parent=1 // pred_region
      %s11 = ssub.s32 2432, 2432
      %12 = vsyncadd [#allocation3], %s11
      %s13 = sshll.u32 [#allocation2], 4
      %s14 = int_to_ptr.vmem [resolvable:$true] %s13
      %19 = dma.hbm_to_vmem [thread:$0]  %s0, 2432, %s14, [#allocation3], 128, 128, 8
    $region5: #{tpu_custom_call.1} parent=1 // pred_fallthru
      _
    // Predicated region
    $region6: #{tpu_custom_call.1} parent=1 // pred_check
      _
    $region7: #{tpu_custom_call.1} parent=1 // pred_check_branch
      %21 = sbr.rel (0) target = $region9
    $region8: #{tpu_custom_call.1} parent=1 // pred_region
      %22 = dma.done [#allocation3], 2432
    $region9: #{tpu_custom_call.1} parent=1 // pred_fallthru
      _
    %v23 = vld [vmem:[#allocation2] sm:$0xff]
    %s24 = scalar_lea.vmem [#allocation2], 8
    %v25 = vld [vmem:[%s24] sm:$0xff]
    %s26 = scalar_lea.vmem [#allocation2], 16
    %v27 = vld [vmem:[%s26] sm:$0xff]
    %s28 = scalar_lea.vmem [#allocation2], 24
    %v29 = vld [vmem:[%s28] sm:$0xff]
    %s30 = scalar_lea.vmem [#allocation2], 32
    %v31 = vld [vmem:[%s30] sm:$0xff]
    %s32 = scalar_lea.vmem [#allocation2], 40
    %v33 = vld [vmem:[%s32] sm:$0xff]
    %s34 = scalar_lea.vmem [#allocation2], 48
    %v35 = vld [vmem:[%s34] sm:$0xff]
    %s36 = scalar_lea.vmem [#allocation2], 56
    %v37 = vld [vmem:[%s36] sm:$0xff]
    %s38 = scalar_lea.vmem [#allocation2], 64
    %v39 = vld [vmem:[%s38] sm:$0xff]
    %s40 = scalar_lea.vmem [#allocation2], 72
    %v41 = vld [vmem:[%s40] sm:$0xff]
    %s42 = scalar_lea.vmem [#allocation2], 80
    %v43 = vld [vmem:[%s42] sm:$0xff]
    %s44 = scalar_lea.vmem [#allocation2], 88
    %v45 = vld [vmem:[%s44] sm:$0xff]
    %s46 = scalar_lea.vmem [#allocation2], 96
    %v47 = vld [vmem:[%s46] sm:$0xff]
    %s48 = scalar_lea.vmem [#allocation2], 104
    %v49 = vld [vmem:[%s48] sm:$0xff]
    %s50 = scalar_lea.vmem [#allocation2], 112
    %v51 = vld [vmem:[%s50] sm:$0xff]
    %s52 = scalar_lea.vmem [#allocation2], 120
    %v53 = vld [vmem:[%s52] sm:$0xff]
    %s54 = scalar_lea.vmem [#allocation2], 128
    %v55 = vld [vmem:[%s54] sm:$0xff]
    %s56 = scalar_lea.vmem [#allocation2], 136
    %v57 = vld [vmem:[%s56] sm:$0xff]
    %s58 = scalar_lea.vmem [#allocation2], 144
    %v59 = vld [vmem:[%s58] sm:$0xff]
    %v60 = vmul.f32 %v23, %v41
    %v61 = vmul.f32 %v25, %v43
    %v62 = vadd.f32 %v60, %v61
    %v63 = vmul.f32 %v27, %v45
    %v64 = vadd.f32 %v62, %v63
    %65 = vst [vmem:[#allocation5] sm:$0xff] %v64
    %v66 = vmul.f32 %v29, %v41
    %v67 = vmul.f32 %v31, %v43
    %v68 = vadd.f32 %v66, %v67
    %v69 = vmul.f32 %v33, %v45
    %v70 = vadd.f32 %v68, %v69
    %s71 = scalar_lea.vmem [#allocation5], 8
    %72 = vst [vmem:[%s71] sm:$0xff] %v70
    %v73 = vmul.f32 %v35, %v41
    %v74 = vmul.f32 %v37, %v43
    %v75 = vadd.f32 %v73, %v74
    %v76 = vmul.f32 %v39, %v45
    %v77 = vadd.f32 %v75, %v76
    %s78 = scalar_lea.vmem [#allocation5], 16
    %79 = vst [vmem:[%s78] sm:$0xff] %v77
    %v80 = vmul.f32 %v25, %v51
    %v81 = vmul.f32 %v27, %v49
    %v82 = vsub.f32 %v80, %v81
    %s83 = scalar_lea.vmem [#allocation5], 24
    %84 = vst [vmem:[%s83] sm:$0xff] %v82
    %v85 = vmul.f32 %v27, %v47
    %v86 = vmul.f32 %v23, %v51
    %v87 = vsub.f32 %v85, %v86
    %s88 = scalar_lea.vmem [#allocation5], 32
    %89 = vst [vmem:[%s88] sm:$0xff] %v87
    %v90 = vmul.f32 %v23, %v49
    %v91 = vmul.f32 %v25, %v47
    %v92 = vsub.f32 %v90, %v91
    %s93 = scalar_lea.vmem [#allocation5], 40
    %94 = vst [vmem:[%s93] sm:$0xff] %v92
    %v95 = vmul.f32 %v31, %v51
    %v96 = vmul.f32 %v33, %v49
    %v97 = vsub.f32 %v95, %v96
    %s98 = scalar_lea.vmem [#allocation5], 48
    %99 = vst [vmem:[%s98] sm:$0xff] %v97
    %v100 = vmul.f32 %v33, %v47
    %v101 = vmul.f32 %v29, %v51
    %v102 = vsub.f32 %v100, %v101
    %s103 = scalar_lea.vmem [#allocation5], 56
    %104 = vst [vmem:[%s103] sm:$0xff] %v102
    %v105 = vmul.f32 %v29, %v49
    %v106 = vmul.f32 %v31, %v47
    %v107 = vsub.f32 %v105, %v106
    %s108 = scalar_lea.vmem [#allocation5], 64
    %109 = vst [vmem:[%s108] sm:$0xff] %v107
    %v110 = vmul.f32 %v37, %v51
    %v111 = vmul.f32 %v39, %v49
    %v112 = vsub.f32 %v110, %v111
    %s113 = scalar_lea.vmem [#allocation5], 72
    %114 = vst [vmem:[%s113] sm:$0xff] %v112
    %v115 = vmul.f32 %v39, %v47
    %v116 = vmul.f32 %v35, %v51
    %v117 = vsub.f32 %v115, %v116
    %s118 = scalar_lea.vmem [#allocation5], 80
    %119 = vst [vmem:[%s118] sm:$0xff] %v117
    %v120 = vmul.f32 %v35, %v49
    %v121 = vmul.f32 %v37, %v47
    %v122 = vsub.f32 %v120, %v121
    %s123 = scalar_lea.vmem [#allocation5], 88
    %124 = vst [vmem:[%s123] sm:$0xff] %v122
    %v125 = vmul.f32 %v41, 0.027
    %v126 = vmul.f32 %v43, 0.027
    %v127 = vmul.f32 %v45, 0.027
    %v128 = vmul.f32 %v47, 2.3951e-05
    %v129 = vmul.f32 %v49, 2.3951e-05
    %v130 = vmul.f32 %v51, 3.2347e-05
    %v131 = vmul.f32 %v126, %v51
    %v132 = vmul.f32 %v127, %v49
    %v133 = vsub.f32 %v131, %v132
    %v134 = vmul.f32 %v35, 0.26487
    %v135 = vsub.f32 %v133, %v134
    %v136 = vmul.f32 %v135, 37.037037
    %s137 = scalar_lea.vmem [#allocation5], 96
    %138 = vst [vmem:[%s137] sm:$0xff] %v136
    %v139 = vmul.f32 %v127, %v47
    %v140 = vmul.f32 %v125, %v51
    %v141 = vsub.f32 %v139, %v140
    %v142 = vmul.f32 %v37, 0.26487
    %v143 = vsub.f32 %v141, %v142
    %v144 = vmul.f32 %v143, 37.037037
    %s145 = scalar_lea.vmem [#allocation5], 104
    %146 = vst [vmem:[%s145] sm:$0xff] %v144
    %v147 = vmul.f32 %v125, %v49
    %v148 = vmul.f32 %v126, %v47
    %v149 = vsub.f32 %v147, %v148
    %v150 = vmul.f32 %v39, 0.26487
    %v151 = vsub.f32 %v149, %v150
    %v152 = vadd.f32 %v151, %v53
    %v153 = vmul.f32 %v152, 37.037037
    %s154 = scalar_lea.vmem [#allocation5], 112
    %155 = vst [vmem:[%s154] sm:$0xff] %v153
    %v156 = vmul.f32 %v129, %v51
    %v157 = vmul.f32 %v130, %v49
    %v158 = vsub.f32 %v156, %v157
    %v159 = vadd.f32 %v158, %v55
    %v160 = vmul.f32 %v159, 41751.91
    %s161 = scalar_lea.vmem [#allocation5], 120
    %162 = vst [vmem:[%s161] sm:$0xff] %v160
    %v163 = vmul.f32 %v130, %v47
    %v164 = vmul.f32 %v128, %v51
    %v165 = vsub.f32 %v163, %v164
    %v166 = vadd.f32 %v165, %v57
    %v167 = vmul.f32 %v166, 41751.91
    %s168 = scalar_lea.vmem [#allocation5], 128
    %169 = vst [vmem:[%s168] sm:$0xff] %v167
    %v170 = vmul.f32 %v128, %v49
    %v171 = vmul.f32 %v129, %v47
    %v172 = vsub.f32 %v170, %v171
    %v173 = vadd.f32 %v172, %v59
    %v174 = vmul.f32 %v173, 30914.768
    %s175 = scalar_lea.vmem [#allocation5], 136
    %176 = vst [vmem:[%s175] sm:$0xff] %v174
    // Predicated region
    $region10: #{tpu_custom_call.1} parent=1 // pred_check
      _
    $region11: #{tpu_custom_call.1} parent=1 // pred_check_branch
      %178 = sbr.rel (0) target = $region13
    $region12: #{tpu_custom_call.1} parent=1 // pred_region
      %s180 = ssub.s32 2304, 2304
      %181 = vsyncadd [#allocation4], %s180
      %s182 = sshll.u32 [#allocation5], 4
      %s183 = int_to_ptr.vmem [resolvable:$true] %s182
      %188 = dma.vmem_to_hbm [thread:$0]  %s183, 2304, %s1, [#allocation4], 128, 128, 8
    $region13: #{tpu_custom_call.1} parent=1 // pred_fallthru
      _
    // Predicated region
    $region14: #{tpu_custom_call.1} parent=1 // pred_check
      _
    $region15: #{tpu_custom_call.1} parent=1 // pred_check_branch
      %190 = sbr.rel (0) target = $region17
    $region16: #{tpu_custom_call.1} parent=1 // pred_region
      %191 = dma.done [#allocation4], 2304
    $region17: #{tpu_custom_call.1} parent=1 // pred_fallthru
      _
    %192 = vsyncpa [#allocation3], 1
    %193 = vsyncpa [#allocation4], 1

</llo_original>
